<compile_context>
chip_gen: v5e
topology: v5e:2x2
jax: 0.10.0
libtpu: 0.0.40
codegen_flags: <defaults>
</compile_context>

<pallas_src>
import jax
import jax.numpy as jnp
from jax.experimental import pallas as pl
from jax.experimental.pallas import tpu as pltpu

LANE = 128
H1, H2 = 256, 768  # hidden sizes fixed by the module (already lane-aligned)


def _round_up(x, m):
    return (x + m - 1) // m * m


def _choose_batch_tile(batch, batch_tile):
    """Pick the batch tile: 8-aligned for tiny batches, 256-aligned (MXU M)
    and >=2 grid steps for large batches."""
    b8 = _round_up(batch, 8)
    if b8 <= 256:
        return b8  # single tile, minimal padding
    half = _round_up(pl.cdiv(b8, 2), 256)   # guarantee grid >= 2 when possible
    return max(256, min(batch_tile, half))


def mlp_kernel(x_ref, w1_ref, b1_ref, w2_ref, b2_ref, w3_ref, b3_ref, out_ref):
    x = x_ref[...]                                                      # [tb, d_in] bf16
    h1 = jnp.dot(x, w1_ref[...], preferred_element_type=jnp.float32)   # [tb, 256] f32
    h1 = jnp.maximum(h1 + b1_ref[...], 0.0)
    h2 = jnp.dot(h1.astype(jnp.bfloat16), w2_ref[...],
                 preferred_element_type=jnp.float32)                   # [tb, 768] f32
    h2 = jnp.maximum(h2 + b2_ref[...], 0.0)
    logits = jnp.dot(h2.astype(jnp.bfloat16), w3_ref[...],
                     preferred_element_type=jnp.float32)                # [tb, Cp] f32
    out_ref[...] = (logits + b3_ref[...]).astype(out_ref.dtype)


def nn_forward(features, params, *, batch_tile=1024):
    """features: [B, input_size] float32. Returns logits [B, num_classes] f32."""
    w1, b1, w2, b2, w3, b3 = params
    batch, d_in = features.shape
    num_classes = w3.shape[1]

    c_pad = _round_up(num_classes, LANE)     # lane-dense output store
    tb = _choose_batch_tile(batch, batch_tile)
    b_pad = _round_up(batch, tb)

    # bf16 operands for the MXU (weights once, features fused with batch pad).
    x_p = jnp.pad(features.astype(jnp.bfloat16), ((0, b_pad - batch), (0, 0)))
    w1_b = w1.astype(jnp.bfloat16)
    w2_b = w2.astype(jnp.bfloat16)
    w3_b = jnp.pad(w3, ((0, 0), (0, c_pad - num_classes))).astype(jnp.bfloat16)
    b3_p = jnp.pad(b3, ((0, 0), (0, c_pad - num_classes)))   # f32, padded cols

    grid = (b_pad // tb,)

    def resident(arr):
        # Whole-array block, same block every grid step -> stays in VMEM.
        return pl.BlockSpec(arr.shape, lambda i: (0, 0))

    flops = 2 * b_pad * (d_in * H1 + H1 * H2 + H2 * c_pad)
    bytes_accessed = (2 * (x_p.size + w1_b.size + w2_b.size + w3_b.size)
                      + 4 * (b1.size + b2.size + b3_p.size + b_pad * c_pad))

    logits_padded = pl.pallas_call(
        mlp_kernel,
        out_shape=jax.ShapeDtypeStruct((b_pad, c_pad), jnp.float32),
        grid=grid,
        in_specs=[
            # last dim == full array dim (d_in), so no 128-divisibility needed
            pl.BlockSpec((tb, d_in), lambda i: (i, 0)),
            resident(w1_b), resident(b1),
            resident(w2_b), resident(b2),
            resident(w3_b), resident(b3_p),
        ],
        out_specs=pl.BlockSpec((tb, c_pad), lambda i: (i, 0)),
        compiler_params=pltpu.CompilerParams(
            dimension_semantics=("parallel",)),
        cost_estimate=pl.CostEstimate(
            flops=flops, bytes_accessed=bytes_accessed, transcendentals=0),
    )(x_p, w1_b, b1, w2_b, b2, w3_b, b3_p)

    # NOTE: a downstream kernel (e.g. a future CE-loss kernel) could consume
    # the padded [b_pad, c_pad] slab directly and skip this crop.
    return logits_padded[:batch, :num_classes]


def init_params(key, input_size, num_classes):
    """Deterministic init mimicking nn.Linear (uniform +/- 1/sqrt(fan_in)).
    Weights stored as [in, out] (pre-transposed vs. PyTorch's [out, in])."""
    dims = [(input_size, H1), (H1, H2), (H2, num_classes)]
    params = []
    for (fan_in, fan_out) in dims:
        key, kw, kb = jax.random.split(key, 3)
        bound = 1.0 / (fan_in ** 0.5)
        w = jax.random.uniform(kw, (fan_in, fan_out), jnp.float32, -bound, bound)
        b = jax.random.uniform(kb, (1, fan_out), jnp.float32, -bound, bound)
        params += [w, b]
    return tuple(params)


def reference_forward(features, params):
    w1, b1, w2, b2, w3, b3 = params
    h1 = jnp.maximum(features @ w1 + b1, 0.0)
    h2 = jnp.maximum(h1 @ w2 + b2, 0.0)
    return h2 @ w3 + b3


# TODO(synk): CrossEntropyLoss branch (labels is not None) of the PyTorch
# module is not implemented in the kernel; only the logits path is covered.

if __name__ == "__main__":
    key = jax.random.PRNGKey(0)
    batch, input_size, num_classes = 8, 32, 16

    k_x, k_p = jax.random.split(key)
    features = jax.random.normal(k_x, (batch, input_size), jnp.float32)
    params = init_params(k_p, input_size, num_classes)

    logits = jax.block_until_ready(nn_forward(features, params))
    ref = reference_forward(features, params)

    assert logits.shape == (batch, num_classes)
    # bf16 MXU operands with f32 accumulation -> relaxed tolerance vs f32 ref.
    assert jnp.allclose(logits, ref, atol=3e-2, rtol=3e-2)
    print("KERNEL_OK")
</pallas_src>

<mosaic_0001>
module attributes {stable_mosaic.version = 11 : i64} {
  func.func @mlp_kernel(%arg0: i32, %arg1: memref<8x32xbf16, #tpu.memory_space<vmem>>, %arg2: memref<32x256xbf16, #tpu.memory_space<vmem>>, %arg3: memref<1x256xf32, #tpu.memory_space<vmem>>, %arg4: memref<256x768xbf16, #tpu.memory_space<vmem>>, %arg5: memref<1x768xf32, #tpu.memory_space<vmem>>, %arg6: memref<768x128xbf16, #tpu.memory_space<vmem>>, %arg7: memref<1x128xf32, #tpu.memory_space<vmem>>, %arg8: memref<8x128xf32, #tpu.memory_space<vmem>>) attributes {dimension_semantics = [#tpu.dimension_semantics<parallel>], iteration_bounds = array<i64: 1>, scalar_prefetch = 0 : i64, scratch_operands = 0 : i64, tpu.core_type = #tpu.core_type<tc>, window_params = [{transform_indices = @transform_0, window_bounds = array<i64: 8, 32>}, {pipeline_mode = #tpu.pipeline_mode<synchronous>, transform_indices = @transform_1, window_bounds = array<i64: 32, 256>}, {pipeline_mode = #tpu.pipeline_mode<synchronous>, transform_indices = @transform_2, window_bounds = array<i64: 1, 256>}, {pipeline_mode = #tpu.pipeline_mode<synchronous>, transform_indices = @transform_3, window_bounds = array<i64: 256, 768>}, {pipeline_mode = #tpu.pipeline_mode<synchronous>, transform_indices = @transform_4, window_bounds = array<i64: 1, 768>}, {pipeline_mode = #tpu.pipeline_mode<synchronous>, transform_indices = @transform_5, window_bounds = array<i64: 768, 128>}, {pipeline_mode = #tpu.pipeline_mode<synchronous>, transform_indices = @transform_6, window_bounds = array<i64: 1, 128>}, {transform_indices = @transform_7, window_bounds = array<i64: 8, 128>}]} {
    %c0 = arith.constant 0 : index
    %c0_0 = arith.constant 0 : index
    %0 = vector.load %arg1[%c0, %c0_0] : memref<8x32xbf16, #tpu.memory_space<vmem>>, vector<8x32xbf16>
    %c0_1 = arith.constant 0 : index
    %c0_2 = arith.constant 0 : index
    %1 = vector.load %arg2[%c0_1, %c0_2] : memref<32x256xbf16, #tpu.memory_space<vmem>>, vector<32x256xbf16>
    %cst = arith.constant dense<0.000000e+00> : vector<8x256xf32>
    %2 = tpu.matmul %0, %1, %cst {dimension_numbers = #tpu.dot_dimension_numbers<[1], [0], [0], [1], [0, 0, 1, 1], [], []>} : vector<8x32xbf16>, vector<32x256xbf16>, vector<8x256xf32> -> vector<8x256xf32>
    %c0_3 = arith.constant 0 : index
    %c0_4 = arith.constant 0 : index
    %3 = vector.load %arg3[%c0_3, %c0_4] : memref<1x256xf32, #tpu.memory_space<vmem>>, vector<1x256xf32>
    %4 = vector.broadcast %3 : vector<1x256xf32> to vector<8x256xf32>
    %5 = arith.addf %2, %4 : vector<8x256xf32>
    %cst_5 = arith.constant 0.000000e+00 : f32
    %6 = vector.broadcast %cst_5 : f32 to vector<8x256xf32>
    %7 = arith.maximumf %5, %6 : vector<8x256xf32>
    %8 = arith.truncf %7 : vector<8x256xf32> to vector<8x256xbf16>
    %c0_6 = arith.constant 0 : index
    %c0_7 = arith.constant 0 : index
    %9 = vector.load %arg4[%c0_6, %c0_7] : memref<256x768xbf16, #tpu.memory_space<vmem>>, vector<256x768xbf16>
    %cst_8 = arith.constant dense<0.000000e+00> : vector<8x768xf32>
    %10 = tpu.matmul %8, %9, %cst_8 {dimension_numbers = #tpu.dot_dimension_numbers<[1], [0], [0], [1], [0, 0, 1, 1], [], []>} : vector<8x256xbf16>, vector<256x768xbf16>, vector<8x768xf32> -> vector<8x768xf32>
    %c0_9 = arith.constant 0 : index
    %c0_10 = arith.constant 0 : index
    %11 = vector.load %arg5[%c0_9, %c0_10] : memref<1x768xf32, #tpu.memory_space<vmem>>, vector<1x768xf32>
    %12 = vector.broadcast %11 : vector<1x768xf32> to vector<8x768xf32>
    %13 = arith.addf %10, %12 : vector<8x768xf32>
    %cst_11 = arith.constant 0.000000e+00 : f32
    %14 = vector.broadcast %cst_11 : f32 to vector<8x768xf32>
    %15 = arith.maximumf %13, %14 : vector<8x768xf32>
    %16 = arith.truncf %15 : vector<8x768xf32> to vector<8x768xbf16>
    %c0_12 = arith.constant 0 : index
    %c0_13 = arith.constant 0 : index
    %17 = vector.load %arg6[%c0_12, %c0_13] : memref<768x128xbf16, #tpu.memory_space<vmem>>, vector<768x128xbf16>
    %cst_14 = arith.constant dense<0.000000e+00> : vector<8x128xf32>
    %18 = tpu.matmul %16, %17, %cst_14 {dimension_numbers = #tpu.dot_dimension_numbers<[1], [0], [0], [1], [0, 0, 1, 1], [], []>} : vector<8x768xbf16>, vector<768x128xbf16>, vector<8x128xf32> -> vector<8x128xf32>
    %c0_15 = arith.constant 0 : index
    %c0_16 = arith.constant 0 : index
    %19 = vector.load %arg7[%c0_15, %c0_16] : memref<1x128xf32, #tpu.memory_space<vmem>>, vector<1x128xf32>
    %20 = vector.broadcast %19 : vector<1x128xf32> to vector<8x128xf32>
    %21 = arith.addf %18, %20 : vector<8x128xf32>
    %c0_17 = arith.constant 0 : index
    %c0_18 = arith.constant 0 : index
    %22 = vector.load %arg8[%c0_17, %c0_18] : memref<8x128xf32, #tpu.memory_space<vmem>>, vector<8x128xf32>
    tpu.vector_store %arg8[%c0_17, %c0_18], %21 {strides = array<i32>} : memref<8x128xf32, #tpu.memory_space<vmem>>, vector<8x128xf32>,
    return
  }
  func.func @transform_0(%arg0: i32) -> (i32, i32) {
    %c0_i32 = arith.constant 0 : i32
    %c0_i32_0 = arith.constant 0 : i32
    return %arg0, %c0_i32 : i32, i32
  }
  func.func @transform_1(%arg0: i32) -> (i32, i32) {
    %c0_i32 = arith.constant 0 : i32
    %c0_i32_0 = arith.constant 0 : i32
    %c0_i32_1 = arith.constant 0 : i32
    return %c0_i32, %c0_i32_0 : i32, i32
  }
  func.func @transform_2(%arg0: i32) -> (i32, i32) {
    %c0_i32 = arith.constant 0 : i32
    %c0_i32_0 = arith.constant 0 : i32
    %c0_i32_1 = arith.constant 0 : i32
    return %c0_i32, %c0_i32_0 : i32, i32
  }
  func.func @transform_3(%arg0: i32) -> (i32, i32) {
    %c0_i32 = arith.constant 0 : i32
    %c0_i32_0 = arith.constant 0 : i32
    %c0_i32_1 = arith.constant 0 : i32
    return %c0_i32, %c0_i32_0 : i32, i32
  }
  func.func @transform_4(%arg0: i32) -> (i32, i32) {
    %c0_i32 = arith.constant 0 : i32
    %c0_i32_0 = arith.constant 0 : i32
    %c0_i32_1 = arith.constant 0 : i32
    return %c0_i32, %c0_i32_0 : i32, i32
  }
  func.func @transform_5(%arg0: i32) -> (i32, i32) {
    %c0_i32 = arith.constant 0 : i32
    %c0_i32_0 = arith.constant 0 : i32
    %c0_i32_1 = arith.constant 0 : i32
    return %c0_i32, %c0_i32_0 : i32, i32
  }
  func.func @transform_6(%arg0: i32) -> (i32, i32) {
    %c0_i32 = arith.constant 0 : i32
    %c0_i32_0 = arith.constant 0 : i32
    %c0_i32_1 = arith.constant 0 : i32
    return %c0_i32, %c0_i32_0 : i32, i32
  }
  func.func @transform_7(%arg0: i32) -> (i32, i32) {
    %c0_i32 = arith.constant 0 : i32
    %c0_i32_0 = arith.constant 0 : i32
    return %arg0, %c0_i32 : i32, i32
  }
}

</mosaic_0001>

<llo_original>
// kernel: tpu_custom_call.1
$region0: #{tpu_custom_call.1}
  #allocation0 [shape = 'u32[]', space=smem, size = 0x4, offset = 0x4, fixed_abs, tag = 'smem constant byte address 0x4 - core index']
  #allocation1 [shape = 'u32[72,128]{1,0:T(1,128)}', space=vmem, size = 0x9000, scoped, tag = 'internal scratch']
  %s0 = inlined_call_operand.hbm [shape: bf16[8,32], index: 0, kind: input, shape index: {}]
  %s1 = inlined_call_operand.hbm [shape: bf16[32,256], index: 1, kind: input, shape index: {}]
  %s2 = inlined_call_operand.hbm [shape: f32[1,256], index: 2, kind: input, shape index: {}]
  %s3 = inlined_call_operand.hbm [shape: bf16[256,768], index: 3, kind: input, shape index: {}]
  %s4 = inlined_call_operand.hbm [shape: f32[1,768], index: 4, kind: input, shape index: {}]
  %s5 = inlined_call_operand.hbm [shape: bf16[768,128], index: 5, kind: input, shape index: {}]
  %s6 = inlined_call_operand.vmem [shape: f32[1,128], index: 6, kind: input, shape index: {}]
  %s7 = inlined_call_operand.hbm [shape: f32[8,128], index: 7, kind: output, shape index: {}]
  %s8 = sld [smem:[#allocation0]]
  $region62: #{tpu_custom_call.1} parent=0
    _
  %s10 = ssub.s32 1, %s8
  %s11 = scalar_select 0, %s10, %s8
  $region1: #{tpu_custom_call.1} parent=0
    #allocation2 [shape = 'u8[2048]{0}', space=vmem, size = 0x800, scoped, tag = 'input window, operand 0, single buffered']
    #allocation3 [shape = 's32[1]{0}', space=sflag, size = 0x4, scoped, tag = 'scoped memory for tpu_custom_call.1']
    #allocation4 [shape = 's32[1]{0}', space=sflag, size = 0x4, scoped, tag = 'scoped memory for tpu_custom_call.1']
    #allocation5 [shape = 'u8[16384]{0}', space=vmem, size = 0x4000, scoped, tag = 'input window, operand 1, single buffered']
    #allocation6 [shape = 's32[1]{0}', space=sflag, size = 0x4, scoped, tag = 'scoped memory for tpu_custom_call.1']
    #allocation7 [shape = 'u8[1024]{0}', space=vmem, size = 0x400, scoped, tag = 'input window, operand 2, single buffered']
    #allocation8 [shape = 'u8[393216]{0}', space=vmem, size = 0x60000, scoped, tag = 'input window, operand 3, single buffered']
    #allocation9 [shape = 's32[1]{0}', space=sflag, size = 0x4, scoped, tag = 'scoped memory for tpu_custom_call.1']
    #allocation10 [shape = 'u8[3072]{0}', space=vmem, size = 0xc00, scoped, tag = 'input window, operand 4, single buffered']
    #allocation11 [shape = 'u8[196608]{0}', space=vmem, size = 0x30000, scoped, tag = 'input window, operand 5, single buffered']
    #allocation12 [shape = 's32[1]{0}', space=sflag, size = 0x4, scoped, tag = 'scoped memory for tpu_custom_call.1']
    #allocation13 [shape = 'u8[4096]{0}', space=vmem, size = 0x1000, scoped, tag = 'output window, operand 0, single buffered']
    %12 = vsyncpa [#allocation3], 0
    %13 = vsyncpa [#allocation6], 0
    %14 = vsyncpa [#allocation9], 0
    %15 = vsyncpa [#allocation12], 0
    %16 = vsyncpa [#allocation4], 0
    // Predicated region
    $region2: #{tpu_custom_call.1} parent=1 // pred_check
      _
    $region3: #{tpu_custom_call.1} parent=1 // pred_check_branch
      %18 = sbr.rel (0) target = $region5
    $region4: #{tpu_custom_call.1} parent=1 // pred_region
      %20 = vsyncadd [#allocation3], 0
      %s22 = sshll.u32 %s0, 4
      %s23 = int_to_ptr.hbm [resolvable:$true] %s22
      %s24 = sshll.u32 [#allocation2], 4
      %s25 = int_to_ptr.vmem [resolvable:$true] %s24
      %27 = dma.hbm_to_vmem [thread:$0]  %s23, 64, %s25, [#allocation3]
    $region5: #{tpu_custom_call.1} parent=1 // pred_fallthru
      _
    // Predicated region
    $region6: #{tpu_custom_call.1} parent=1 // pred_check
      _
    $region7: #{tpu_custom_call.1} parent=1 // pred_check_branch
      %29 = sbr.rel (0) target = $region9
    $region8: #{tpu_custom_call.1} parent=1 // pred_region
      %31 = vsyncadd [#allocation6], 0
      %s32 = sshll.u32 %s1, 4
      %s33 = int_to_ptr.hbm [resolvable:$true] %s32
      %s34 = sshll.u32 [#allocation5], 4
      %s35 = int_to_ptr.vmem [resolvable:$true] %s34
      %40 = dma.hbm_to_vmem [thread:$0]  %s33, 512, %s35, [#allocation6], 128, 128, 8
    $region9: #{tpu_custom_call.1} parent=1 // pred_fallthru
      _
    // Predicated region
    $region10: #{tpu_custom_call.1} parent=1 // pred_check
      _
    $region11: #{tpu_custom_call.1} parent=1 // pred_check_branch
      %42 = sbr.rel (0) target = $region13
    $region12: #{tpu_custom_call.1} parent=1 // pred_region
      %44 = vsyncadd [#allocation6], 0
      %s46 = sshll.u32 %s2, 4
      %s47 = int_to_ptr.hbm [resolvable:$true] %s46
      %s48 = sshll.u32 [#allocation7], 4
      %s49 = int_to_ptr.vmem [resolvable:$true] %s48
      %51 = dma.hbm_to_vmem [thread:$0]  %s47, 32, %s49, [#allocation6]
    $region13: #{tpu_custom_call.1} parent=1 // pred_fallthru
      _
    // Predicated region
    $region14: #{tpu_custom_call.1} parent=1 // pred_check
      _
    $region15: #{tpu_custom_call.1} parent=1 // pred_check_branch
      %53 = sbr.rel (0) target = $region17
    $region16: #{tpu_custom_call.1} parent=1 // pred_region
      %55 = vsyncadd [#allocation9], 0
      %s56 = sshll.u32 %s3, 4
      %s57 = int_to_ptr.hbm [resolvable:$true] %s56
      %s58 = sshll.u32 [#allocation8], 4
      %s59 = int_to_ptr.vmem [resolvable:$true] %s58
      %64 = dma.hbm_to_vmem [thread:$0]  %s57, 12288, %s59, [#allocation9], 384, 384, 24
    $region17: #{tpu_custom_call.1} parent=1 // pred_fallthru
      _
    // Predicated region
    $region18: #{tpu_custom_call.1} parent=1 // pred_check
      _
    $region19: #{tpu_custom_call.1} parent=1 // pred_check_branch
      %66 = sbr.rel (0) target = $region21
    $region20: #{tpu_custom_call.1} parent=1 // pred_region
      %68 = vsyncadd [#allocation9], 0
      %s70 = sshll.u32 %s4, 4
      %s71 = int_to_ptr.hbm [resolvable:$true] %s70
      %s72 = sshll.u32 [#allocation10], 4
      %s73 = int_to_ptr.vmem [resolvable:$true] %s72
      %75 = dma.hbm_to_vmem [thread:$0]  %s71, 96, %s73, [#allocation9]
    $region21: #{tpu_custom_call.1} parent=1 // pred_fallthru
      _
    // Predicated region
    $region22: #{tpu_custom_call.1} parent=1 // pred_check
      _
    $region23: #{tpu_custom_call.1} parent=1 // pred_check_branch
      %77 = sbr.rel (0) target = $region25
    $region24: #{tpu_custom_call.1} parent=1 // pred_region
      %79 = vsyncadd [#allocation12], 0
      %s80 = sshll.u32 %s5, 4
      %s81 = int_to_ptr.hbm [resolvable:$true] %s80
      %s82 = sshll.u32 [#allocation11], 4
      %s83 = int_to_ptr.vmem [resolvable:$true] %s82
      %88 = dma.hbm_to_vmem [thread:$0]  %s81, 6144, %s83, [#allocation12], 64, 64, 4
    $region25: #{tpu_custom_call.1} parent=1 // pred_fallthru
      _
    // Predicated region
    $region26: #{tpu_custom_call.1} parent=1 // pred_check
      _
    $region27: #{tpu_custom_call.1} parent=1 // pred_check_branch
      %90 = sbr.rel (0) target = $region29
    $region28: #{tpu_custom_call.1} parent=1 // pred_region
      _
    $region29: #{tpu_custom_call.1} parent=1 // pred_fallthru
      _
    // Predicated region
    $region30: #{tpu_custom_call.1} parent=1 // pred_check
      _
    $region31: #{tpu_custom_call.1} parent=1 // pred_check_branch
      %92 = sbr.rel (0) target = $region33
    $region32: #{tpu_custom_call.1} parent=1 // pred_region
      %94 = dma.done [#allocation3], 64
    $region33: #{tpu_custom_call.1} parent=1 // pred_fallthru
      _
    // Predicated region
    $region34: #{tpu_custom_call.1} parent=1 // pred_check
      _
    $region35: #{tpu_custom_call.1} parent=1 // pred_check_branch
      %96 = sbr.rel (0) target = $region37
    $region36: #{tpu_custom_call.1} parent=1 // pred_region
      %98 = dma.done [#allocation6], 512
    $region37: #{tpu_custom_call.1} parent=1 // pred_fallthru
      _
    // Predicated region
    $region38: #{tpu_custom_call.1} parent=1 // pred_check
      _
    $region39: #{tpu_custom_call.1} parent=1 // pred_check_branch
      %100 = sbr.rel (0) target = $region41
    $region40: #{tpu_custom_call.1} parent=1 // pred_region
      %102 = dma.done [#allocation6], 32
    $region41: #{tpu_custom_call.1} parent=1 // pred_fallthru
      _
    // Predicated region
    $region42: #{tpu_custom_call.1} parent=1 // pred_check
      _
    $region43: #{tpu_custom_call.1} parent=1 // pred_check_branch
      %104 = sbr.rel (0) target = $region45
    $region44: #{tpu_custom_call.1} parent=1 // pred_region
      %106 = dma.done [#allocation9], 12288
    $region45: #{tpu_custom_call.1} parent=1 // pred_fallthru
      _
    // Predicated region
    $region46: #{tpu_custom_call.1} parent=1 // pred_check
      _
    $region47: #{tpu_custom_call.1} parent=1 // pred_check_branch
      %108 = sbr.rel (0) target = $region49
    $region48: #{tpu_custom_call.1} parent=1 // pred_region
      %110 = dma.done [#allocation9], 96
    $region49: #{tpu_custom_call.1} parent=1 // pred_fallthru
      _
    // Predicated region
    $region50: #{tpu_custom_call.1} parent=1 // pred_check
      _
    $region51: #{tpu_custom_call.1} parent=1 // pred_check_branch
      %112 = sbr.rel (0) target = $region53
    $region52: #{tpu_custom_call.1} parent=1 // pred_region
      %114 = dma.done [#allocation12], 6144
    $region53: #{tpu_custom_call.1} parent=1 // pred_fallthru
      _
    %v116 = vld [vmem:[#allocation2] sm:$0xf]
    %v117 = vld [vmem:[#allocation5] sm:$0xff]
    %v118 = vld [vmem:[#allocation5 + $0x8] sm:$0xff]
    %v119 = vld [vmem:[#allocation5 + $0x10] sm:$0xff]
    %v120 = vld [vmem:[#allocation5 + $0x18] sm:$0xff]
    %v121 = vld [vmem:[#allocation7] sm:$0x3]
    %v123 = vperm.slane %v121, 0
    %v124 = vperm.slane %v121, 1
    %v131 = vunpack.c.l.b16 %v117
    %v132 = vunpack.c.h.b16 %v117
    %v133 = vunpack.c.l.b16 %v118
    %v134 = vunpack.c.h.b16 %v118
    %v135 = vunpack.c.l.b16 %v119
    %v136 = vunpack.c.h.b16 %v119
    %v137 = vunpack.c.l.b16 %v120
    %v138 = vunpack.c.h.b16 %v120
    %v139 = vpack.c.b16 %v133, %v131
    %v140 = vpack.c.b16 %v134, %v132
    %v141 = vpack.c.b16 %v137, %v135
    %v142 = vpack.c.b16 %v138, %v136
    %vm147 = vcmask 261120
    %v149 = vsel %vm147, %v116, 0
    %151 = vmatpush.bf16.msra.mxu0 0
    %152 = vmatpush.bf16.msra.mxu0 0
    %153 = vmatpush.bf16.msra.mxu0 0
    %154 = vmatpush.bf16.msra.mxu0 0
    %155 = vmatpush.bf16.msra.mxu0 0
    %156 = vmatpush.bf16.msra.mxu0 0
    %157 = vmatpush.bf16.msra.mxu0 %v141
    %158 = vmatpush.bf16.msra.mxu0 %v139
    %159 = vmatmul.bf16.gmra.mxu0 %v149
    %v160 = vpop.f32.mrf.mxu0
    %v161 = vadd.f32 %v123, %v160
    %v162 = vpop.f32.mrf.mxu0
    %163 = vdwg.mxu0
    %164 = vmatpush.bf16.msra.mxu0 0
    %165 = vmatpush.bf16.msra.mxu0 0
    %166 = vmatpush.bf16.msra.mxu0 0
    %167 = vmatpush.bf16.msra.mxu0 0
    %168 = vmatpush.bf16.msra.mxu0 0
    %169 = vmatpush.bf16.msra.mxu0 0
    %170 = vmatpush.bf16.msra.mxu0 %v142
    %171 = vmatpush.bf16.msra.mxu0 %v140
    %172 = vmatmul.bf16.gmra.mxu0 %v149
    %v173 = vpop.f32.mrf.mxu0
    %v174 = vadd.f32 %v124, %v173
    %v175 = vpop.f32.mrf.mxu0
    %176 = vdwg.mxu0
    %v177 = vmax.f32 %v161, 0.0
    %v178 = vmax.f32 %v174, 0.0
    %v179 = vpack.c.bf16 %v177, %v177
    %v180 = vpack.c.bf16 %v178, %v178
    %v181 = vld [vmem:[#allocation8] sm:$0xff]
    %v182 = vld [vmem:[#allocation8 + $0x8] sm:$0xff]
    %v183 = vld [vmem:[#allocation8 + $0x10] sm:$0xff]
    %v184 = vld [vmem:[#allocation8 + $0x18] sm:$0xff]
    %v185 = vld [vmem:[#allocation8 + $0x20] sm:$0xff]
    %v186 = vld [vmem:[#allocation8 + $0x28] sm:$0xff]
    %v187 = vld [vmem:[#allocation8 + $0x30] sm:$0xff]
    %v188 = vld [vmem:[#allocation8 + $0x38] sm:$0xff]
    %v189 = vld [vmem:[#allocation8 + $0x40] sm:$0xff]
    %v190 = vld [vmem:[#allocation8 + $0x48] sm:$0xff]
    %v191 = vld [vmem:[#allocation8 + $0x50] sm:$0xff]
    %v192 = vld [vmem:[#allocation8 + $0x58] sm:$0xff]
    %v193 = vld [vmem:[#allocation8 + $0x60] sm:$0xff]
    %v194 = vld [vmem:[#allocation8 + $0x68] sm:$0xff]
    %v195 = vld [vmem:[#allocation8 + $0x70] sm:$0xff]
    %v196 = vld [vmem:[#allocation8 + $0x78] sm:$0xff]
    %v197 = vld [vmem:[#allocation8 + $0x80] sm:$0xff]
    %v198 = vld [vmem:[#allocation8 + $0x88] sm:$0xff]
    %v199 = vld [vmem:[#allocation8 + $0x90] sm:$0xff]
    %v200 = vld [vmem:[#allocation8 + $0x98] sm:$0xff]
    %v201 = vld [vmem:[#allocation8 + $0xa0] sm:$0xff]
    %v202 = vld [vmem:[#allocation8 + $0xa8] sm:$0xff]
    %v203 = vld [vmem:[#allocation8 + $0xb0] sm:$0xff]
    %v204 = vld [vmem:[#allocation8 + $0xb8] sm:$0xff]
    %v205 = vld [vmem:[#allocation8 + $0xc0] sm:$0xff]
    %v206 = vld [vmem:[#allocation8 + $0xc8] sm:$0xff]
    %v207 = vld [vmem:[#allocation8 + $0xd0] sm:$0xff]
    %v208 = vld [vmem:[#allocation8 + $0xd8] sm:$0xff]
    %v209 = vld [vmem:[#allocation8 + $0xe0] sm:$0xff]
    %v210 = vld [vmem:[#allocation8 + $0xe8] sm:$0xff]
    %v211 = vld [vmem:[#allocation8 + $0xf0] sm:$0xff]
    %v212 = vld [vmem:[#allocation8 + $0xf8] sm:$0xff]
    %v213 = vld [vmem:[#allocation8 + $0x100] sm:$0xff]
    %v214 = vld [vmem:[#allocation8 + $0x108] sm:$0xff]
    %v215 = vld [vmem:[#allocation8 + $0x110] sm:$0xff]
    %v216 = vld [vmem:[#allocation8 + $0x118] sm:$0xff]
    %v217 = vld [vmem:[#allocation8 + $0x120] sm:$0xff]
    %v218 = vld [vmem:[#allocation8 + $0x128] sm:$0xff]
    %v219 = vld [vmem:[#allocation8 + $0x130] sm:$0xff]
    %v220 = vld [vmem:[#allocation8 + $0x138] sm:$0xff]
    %v221 = vld [vmem:[#allocation8 + $0x140] sm:$0xff]
    %v222 = vld [vmem:[#allocation8 + $0x148] sm:$0xff]
    %v223 = vld [vmem:[#allocation8 + $0x150] sm:$0xff]
    %v224 = vld [vmem:[#allocation8 + $0x158] sm:$0xff]
    %v225 = vld [vmem:[#allocation8 + $0x160] sm:$0xff]
    %v226 = vld [vmem:[#allocation8 + $0x168] sm:$0xff]
    %v227 = vld [vmem:[#allocation8 + $0x170] sm:$0xff]
    %v228 = vld [vmem:[#allocation8 + $0x178] sm:$0xff]
    %v229 = vld [vmem:[#allocation8 + $0x180] sm:$0xff]
    %v230 = vld [vmem:[#allocation8 + $0x188] sm:$0xff]
    %v231 = vld [vmem:[#allocation8 + $0x190] sm:$0xff]
    %v232 = vld [vmem:[#allocation8 + $0x198] sm:$0xff]
    %v233 = vld [vmem:[#allocation8 + $0x1a0] sm:$0xff]
    %v234 = vld [vmem:[#allocation8 + $0x1a8] sm:$0xff]
    %v235 = vld [vmem:[#allocation8 + $0x1b0] sm:$0xff]
    %v236 = vld [vmem:[#allocation8 + $0x1b8] sm:$0xff]
    %v237 = vld [vmem:[#allocation8 + $0x1c0] sm:$0xff]
    %v238 = vld [vmem:[#allocation8 + $0x1c8] sm:$0xff]
    %v239 = vld [vmem:[#allocation8 + $0x1d0] sm:$0xff]
    %v240 = vld [vmem:[#allocation8 + $0x1d8] sm:$0xff]
    %v241 = vld [vmem:[#allocation8 + $0x1e0] sm:$0xff]
    %v242 = vld [vmem:[#allocation8 + $0x1e8] sm:$0xff]
    %v243 = vld [vmem:[#allocation8 + $0x1f0] sm:$0xff]
    %v244 = vld [vmem:[#allocation8 + $0x1f8] sm:$0xff]
    %v245 = vld [vmem:[#allocation8 + $0x200] sm:$0xff]
    %v246 = vld [vmem:[#allocation8 + $0x208] sm:$0xff]
    %v247 = vld [vmem:[#allocation8 + $0x210] sm:$0xff]
    %v248 = vld [vmem:[#allocation8 + $0x218] sm:$0xff]
    %v249 = vld [vmem:[#allocation8 + $0x220] sm:$0xff]
    %v250 = vld [vmem:[#allocation8 + $0x228] sm:$0xff]
    %v251 = vld [vmem:[#allocation8 + $0x230] sm:$0xff]
    %v252 = vld [vmem:[#allocation8 + $0x238] sm:$0xff]
    %v253 = vld [vmem:[#allocation8 + $0x240] sm:$0xff]
    %v254 = vld [vmem:[#allocation8 + $0x248] sm:$0xff]
    %v255 = vld [vmem:[#allocation8 + $0x250] sm:$0xff]
    %v256 = vld [vmem:[#allocation8 + $0x258] sm:$0xff]
    %v257 = vld [vmem:[#allocation8 + $0x260] sm:$0xff]
    %v258 = vld [vmem:[#allocation8 + $0x268] sm:$0xff]
    %v259 = vld [vmem:[#allocation8 + $0x270] sm:$0xff]
    %v260 = vld [vmem:[#allocation8 + $0x278] sm:$0xff]
    %v261 = vld [vmem:[#allocation8 + $0x280] sm:$0xff]
    %v262 = vld [vmem:[#allocation8 + $0x288] sm:$0xff]
    %v263 = vld [vmem:[#allocation8 + $0x290] sm:$0xff]
    %v264 = vld [vmem:[#allocation8 + $0x298] sm:$0xff]
    %v265 = vld [vmem:[#allocation8 + $0x2a0] sm:$0xff]
    %v266 = vld [vmem:[#allocation8 + $0x2a8] sm:$0xff]
    %v267 = vld [vmem:[#allocation8 + $0x2b0] sm:$0xff]
    %v268 = vld [vmem:[#allocation8 + $0x2b8] sm:$0xff]
    %v269 = vld [vmem:[#allocation8 + $0x2c0] sm:$0xff]
    %v270 = vld [vmem:[#allocation8 + $0x2c8] sm:$0xff]
    %v271 = vld [vmem:[#allocation8 + $0x2d0] sm:$0xff]
    %v272 = vld [vmem:[#allocation8 + $0x2d8] sm:$0xff]
    %v273 = vld [vmem:[#allocation8 + $0x2e0] sm:$0xff]
    %v274 = vld [vmem:[#allocation8 + $0x2e8] sm:$0xff]
    %v275 = vld [vmem:[#allocation8 + $0x2f0] sm:$0xff]
    %v276 = vld [vmem:[#allocation8 + $0x2f8] sm:$0xff]
    %v277 = vld [vmem:[#allocation10] sm:$0x3f]
    %v279 = vperm.slane %v277, 0
    %v280 = vperm.slane %v277, 1
    %v281 = vperm.slane %v277, 2
    %v282 = vperm.slane %v277, 3
    %v283 = vperm.slane %v277, 4
    %v284 = vperm.slane %v277, 5
    %v387 = vunpack.c.l.b16 %v181
    %v388 = vunpack.c.h.b16 %v181
    %v389 = vunpack.c.l.b16 %v182
    %v390 = vunpack.c.h.b16 %v182
    %v391 = vunpack.c.l.b16 %v183
    %v392 = vunpack.c.h.b16 %v183
    %v393 = vunpack.c.l.b16 %v184
    %v394 = vunpack.c.h.b16 %v184
    %v395 = vunpack.c.l.b16 %v185
    %v396 = vunpack.c.h.b16 %v185
    %v397 = vunpack.c.l.b16 %v186
    %v398 = vunpack.c.h.b16 %v186
    %v399 = vunpack.c.l.b16 %v187
    %v400 = vunpack.c.h.b16 %v187
    %v401 = vunpack.c.l.b16 %v188
    %v402 = vunpack.c.h.b16 %v188
    %v403 = vunpack.c.l.b16 %v189
    %v404 = vunpack.c.h.b16 %v189
    %v405 = vunpack.c.l.b16 %v190
    %v406 = vunpack.c.h.b16 %v190
    %v407 = vunpack.c.l.b16 %v191
    %v408 = vunpack.c.h.b16 %v191
    %v409 = vunpack.c.l.b16 %v192
    %v410 = vunpack.c.h.b16 %v192
    %v411 = vunpack.c.l.b16 %v193
    %v412 = vunpack.c.h.b16 %v193
    %v413 = vunpack.c.l.b16 %v194
    %v414 = vunpack.c.h.b16 %v194
    %v415 = vunpack.c.l.b16 %v195
    %v416 = vunpack.c.h.b16 %v195
    %v417 = vunpack.c.l.b16 %v196
    %v418 = vunpack.c.h.b16 %v196
    %v419 = vunpack.c.l.b16 %v197
    %v420 = vunpack.c.h.b16 %v197
    %v421 = vunpack.c.l.b16 %v198
    %v422 = vunpack.c.h.b16 %v198
    %v423 = vunpack.c.l.b16 %v199
    %v424 = vunpack.c.h.b16 %v199
    %v425 = vunpack.c.l.b16 %v200
    %v426 = vunpack.c.h.b16 %v200
    %v427 = vunpack.c.l.b16 %v201
    %v428 = vunpack.c.h.b16 %v201
    %v429 = vunpack.c.l.b16 %v202
    %v430 = vunpack.c.h.b16 %v202
    %v431 = vunpack.c.l.b16 %v203
    %v432 = vunpack.c.h.b16 %v203
    %v433 = vunpack.c.l.b16 %v204
    %v434 = vunpack.c.h.b16 %v204
    %v435 = vunpack.c.l.b16 %v205
    %v436 = vunpack.c.h.b16 %v205
    %v437 = vunpack.c.l.b16 %v206
    %v438 = vunpack.c.h.b16 %v206
    %v439 = vunpack.c.l.b16 %v207
    %v440 = vunpack.c.h.b16 %v207
    %v441 = vunpack.c.l.b16 %v208
    %v442 = vunpack.c.h.b16 %v208
    %v443 = vunpack.c.l.b16 %v209
    %v444 = vunpack.c.h.b16 %v209
    %v445 = vunpack.c.l.b16 %v210
    %v446 = vunpack.c.h.b16 %v210
    %v447 = vunpack.c.l.b16 %v211
    %v448 = vunpack.c.h.b16 %v211
    %v449 = vunpack.c.l.b16 %v212
    %v450 = vunpack.c.h.b16 %v212
    %v451 = vunpack.c.l.b16 %v213
    %v452 = vunpack.c.h.b16 %v213
    %v453 = vunpack.c.l.b16 %v214
    %v454 = vunpack.c.h.b16 %v214
    %v455 = vunpack.c.l.b16 %v215
    %v456 = vunpack.c.h.b16 %v215
    %v457 = vunpack.c.l.b16 %v216
    %v458 = vunpack.c.h.b16 %v216
    %v459 = vunpack.c.l.b16 %v217
    %v460 = vunpack.c.h.b16 %v217
    %v461 = vunpack.c.l.b16 %v218
    %v462 = vunpack.c.h.b16 %v218
    %v463 = vunpack.c.l.b16 %v219
    %v464 = vunpack.c.h.b16 %v219
    %v465 = vunpack.c.l.b16 %v220
    %v466 = vunpack.c.h.b16 %v220
    %v467 = vunpack.c.l.b16 %v221
    %v468 = vunpack.c.h.b16 %v221
    %v469 = vunpack.c.l.b16 %v222
    %v470 = vunpack.c.h.b16 %v222
    %v471 = vunpack.c.l.b16 %v223
    %v472 = vunpack.c.h.b16 %v223
    %v473 = vunpack.c.l.b16 %v224
    %v474 = vunpack.c.h.b16 %v224
    %v475 = vunpack.c.l.b16 %v225
    %v476 = vunpack.c.h.b16 %v225
    %v477 = vunpack.c.l.b16 %v226
    %v478 = vunpack.c.h.b16 %v226
    %v479 = vunpack.c.l.b16 %v227
    %v480 = vunpack.c.h.b16 %v227
    %v481 = vunpack.c.l.b16 %v228
    %v482 = vunpack.c.h.b16 %v228
    %v483 = vunpack.c.l.b16 %v229
    %v484 = vunpack.c.h.b16 %v229
    %v485 = vunpack.c.l.b16 %v230
    %v486 = vunpack.c.h.b16 %v230
    %v487 = vunpack.c.l.b16 %v231
    %v488 = vunpack.c.h.b16 %v231
    %v489 = vunpack.c.l.b16 %v232
    %v490 = vunpack.c.h.b16 %v232
    %v491 = vunpack.c.l.b16 %v233
    %v492 = vunpack.c.h.b16 %v233
    %v493 = vunpack.c.l.b16 %v234
    %v494 = vunpack.c.h.b16 %v234
    %v495 = vunpack.c.l.b16 %v235
    %v496 = vunpack.c.h.b16 %v235
    %v497 = vunpack.c.l.b16 %v236
    %v498 = vunpack.c.h.b16 %v236
    %v499 = vunpack.c.l.b16 %v237
    %v500 = vunpack.c.h.b16 %v237
    %v501 = vunpack.c.l.b16 %v238
    %v502 = vunpack.c.h.b16 %v238
    %v503 = vunpack.c.l.b16 %v239
    %v504 = vunpack.c.h.b16 %v239
    %v505 = vunpack.c.l.b16 %v240
    %v506 = vunpack.c.h.b16 %v240
    %v507 = vunpack.c.l.b16 %v241
    %v508 = vunpack.c.h.b16 %v241
    %v509 = vunpack.c.l.b16 %v242
    %v510 = vunpack.c.h.b16 %v242
    %v511 = vunpack.c.l.b16 %v243
    %v512 = vunpack.c.h.b16 %v243
    %v513 = vunpack.c.l.b16 %v244
    %v514 = vunpack.c.h.b16 %v244
    %v515 = vunpack.c.l.b16 %v245
    %v516 = vunpack.c.h.b16 %v245
    %v517 = vunpack.c.l.b16 %v246
    %v518 = vunpack.c.h.b16 %v246
    %v519 = vunpack.c.l.b16 %v247
    %v520 = vunpack.c.h.b16 %v247
    %v521 = vunpack.c.l.b16 %v248
    %v522 = vunpack.c.h.b16 %v248
    %v523 = vunpack.c.l.b16 %v249
    %v524 = vunpack.c.h.b16 %v249
    %v525 = vunpack.c.l.b16 %v250
    %v526 = vunpack.c.h.b16 %v250
    %v527 = vunpack.c.l.b16 %v251
    %v528 = vunpack.c.h.b16 %v251
    %v529 = vunpack.c.l.b16 %v252
    %v530 = vunpack.c.h.b16 %v252
    %v531 = vunpack.c.l.b16 %v253
    %v532 = vunpack.c.h.b16 %v253
    %v533 = vunpack.c.l.b16 %v254
    %v534 = vunpack.c.h.b16 %v254
    %v535 = vunpack.c.l.b16 %v255
    %v536 = vunpack.c.h.b16 %v255
    %v537 = vunpack.c.l.b16 %v256
    %v538 = vunpack.c.h.b16 %v256
    %v539 = vunpack.c.l.b16 %v257
    %v540 = vunpack.c.h.b16 %v257
    %v541 = vunpack.c.l.b16 %v258
    %v542 = vunpack.c.h.b16 %v258
    %v543 = vunpack.c.l.b16 %v259
    %v544 = vunpack.c.h.b16 %v259
    %v545 = vunpack.c.l.b16 %v260
    %v546 = vunpack.c.h.b16 %v260
    %v547 = vunpack.c.l.b16 %v261
    %v548 = vunpack.c.h.b16 %v261
    %v549 = vunpack.c.l.b16 %v262
    %v550 = vunpack.c.h.b16 %v262
    %v551 = vunpack.c.l.b16 %v263
    %v552 = vunpack.c.h.b16 %v263
    %v553 = vunpack.c.l.b16 %v264
    %v554 = vunpack.c.h.b16 %v264
    %v555 = vunpack.c.l.b16 %v265
    %v556 = vunpack.c.h.b16 %v265
    %v557 = vunpack.c.l.b16 %v266
    %v558 = vunpack.c.h.b16 %v266
    %v559 = vunpack.c.l.b16 %v267
    %v560 = vunpack.c.h.b16 %v267
    %v561 = vunpack.c.l.b16 %v268
    %v562 = vunpack.c.h.b16 %v268
    %v563 = vunpack.c.l.b16 %v269
    %v564 = vunpack.c.h.b16 %v269
    %v565 = vunpack.c.l.b16 %v270
    %v566 = vunpack.c.h.b16 %v270
    %v567 = vunpack.c.l.b16 %v271
    %v568 = vunpack.c.h.b16 %v271
    %v569 = vunpack.c.l.b16 %v272
    %v570 = vunpack.c.h.b16 %v272
    %v571 = vunpack.c.l.b16 %v273
    %v572 = vunpack.c.h.b16 %v273
    %v573 = vunpack.c.l.b16 %v274
    %v574 = vunpack.c.h.b16 %v274
    %v575 = vunpack.c.l.b16 %v275
    %v576 = vunpack.c.h.b16 %v275
    %v577 = vunpack.c.l.b16 %v276
    %v578 = vunpack.c.h.b16 %v276
    %v579 = vpack.c.b16 %v393, %v387
    %v580 = vpack.c.b16 %v394, %v388
    %v581 = vpack.c.b16 %v395, %v389
    %v582 = vpack.c.b16 %v396, %v390
    %v583 = vpack.c.b16 %v397, %v391
    %v584 = vpack.c.b16 %v398, %v392
    %v585 = vpack.c.b16 %v405, %v399
    %v586 = vpack.c.b16 %v406, %v400
    %v587 = vpack.c.b16 %v407, %v401
    %v588 = vpack.c.b16 %v408, %v402
    %v589 = vpack.c.b16 %v409, %v403
    %v590 = vpack.c.b16 %v410, %v404
    %v591 = vpack.c.b16 %v417, %v411
    %v592 = vpack.c.b16 %v418, %v412
    %v593 = vpack.c.b16 %v419, %v413
    %v594 = vpack.c.b16 %v420, %v414
    %v595 = vpack.c.b16 %v421, %v415
    %v596 = vpack.c.b16 %v422, %v416
    %v597 = vpack.c.b16 %v429, %v423
    %v598 = vpack.c.b16 %v430, %v424
    %v599 = vpack.c.b16 %v431, %v425
    %v600 = vpack.c.b16 %v432, %v426
    %v601 = vpack.c.b16 %v433, %v427
    %v602 = vpack.c.b16 %v434, %v428
    %v603 = vpack.c.b16 %v441, %v435
    %v604 = vpack.c.b16 %v442, %v436
    %v605 = vpack.c.b16 %v443, %v437
    %v606 = vpack.c.b16 %v444, %v438
    %v607 = vpack.c.b16 %v445, %v439
    %v608 = vpack.c.b16 %v446, %v440
    %v609 = vpack.c.b16 %v453, %v447
    %v610 = vpack.c.b16 %v454, %v448
    %v611 = vpack.c.b16 %v455, %v449
    %v612 = vpack.c.b16 %v456, %v450
    %v613 = vpack.c.b16 %v457, %v451
    %v614 = vpack.c.b16 %v458, %v452
    %v615 = vpack.c.b16 %v465, %v459
    %v616 = vpack.c.b16 %v466, %v460
    %v617 = vpack.c.b16 %v467, %v461
    %v618 = vpack.c.b16 %v468, %v462
    %v619 = vpack.c.b16 %v469, %v463
    %v620 = vpack.c.b16 %v470, %v464
    %v621 = vpack.c.b16 %v477, %v471
    %v622 = vpack.c.b16 %v478, %v472
    %v623 = vpack.c.b16 %v479, %v473
    %v624 = vpack.c.b16 %v480, %v474
    %v625 = vpack.c.b16 %v481, %v475
    %v626 = vpack.c.b16 %v482, %v476
    %v627 = vpack.c.b16 %v489, %v483
    %v628 = vpack.c.b16 %v490, %v484
    %v629 = vpack.c.b16 %v491, %v485
    %v630 = vpack.c.b16 %v492, %v486
    %v631 = vpack.c.b16 %v493, %v487
    %v632 = vpack.c.b16 %v494, %v488
    %v633 = vpack.c.b16 %v501, %v495
    %v634 = vpack.c.b16 %v502, %v496
    %v635 = vpack.c.b16 %v503, %v497
    %v636 = vpack.c.b16 %v504, %v498
    %v637 = vpack.c.b16 %v505, %v499
    %v638 = vpack.c.b16 %v506, %v500
    %v639 = vpack.c.b16 %v513, %v507
    %v640 = vpack.c.b16 %v514, %v508
    %v641 = vpack.c.b16 %v515, %v509
    %v642 = vpack.c.b16 %v516, %v510
    %v643 = vpack.c.b16 %v517, %v511
    %v644 = vpack.c.b16 %v518, %v512
    %v645 = vpack.c.b16 %v525, %v519
    %v646 = vpack.c.b16 %v526, %v520
    %v647 = vpack.c.b16 %v527, %v521
    %v648 = vpack.c.b16 %v528, %v522
    %v649 = vpack.c.b16 %v529, %v523
    %v650 = vpack.c.b16 %v530, %v524
    %v651 = vpack.c.b16 %v537, %v531
    %v652 = vpack.c.b16 %v538, %v532
    %v653 = vpack.c.b16 %v539, %v533
    %v654 = vpack.c.b16 %v540, %v534
    %v655 = vpack.c.b16 %v541, %v535
    %v656 = vpack.c.b16 %v542, %v536
    %v657 = vpack.c.b16 %v549, %v543
    %v658 = vpack.c.b16 %v550, %v544
    %v659 = vpack.c.b16 %v551, %v545
    %v660 = vpack.c.b16 %v552, %v546
    %v661 = vpack.c.b16 %v553, %v547
    %v662 = vpack.c.b16 %v554, %v548
    %v663 = vpack.c.b16 %v561, %v555
    %v664 = vpack.c.b16 %v562, %v556
    %v665 = vpack.c.b16 %v563, %v557
    %v666 = vpack.c.b16 %v564, %v558
    %v667 = vpack.c.b16 %v565, %v559
    %v668 = vpack.c.b16 %v566, %v560
    %v669 = vpack.c.b16 %v573, %v567
    %v670 = vpack.c.b16 %v574, %v568
    %v671 = vpack.c.b16 %v575, %v569
    %v672 = vpack.c.b16 %v576, %v570
    %v673 = vpack.c.b16 %v577, %v571
    %v674 = vpack.c.b16 %v578, %v572
    %771 = vmatpush.bf16.msra.mxu0 %v621
    %772 = vmatpush.bf16.msra.mxu0 %v615
    %773 = vmatpush.bf16.msra.mxu0 %v609
    %774 = vmatpush.bf16.msra.mxu0 %v603
    %775 = vmatpush.bf16.msra.mxu0 %v597
    %776 = vmatpush.bf16.msra.mxu0 %v591
    %777 = vmatpush.bf16.msra.mxu0 %v585
    %778 = vmatpush.bf16.msra.mxu0 %v579
    %779 = vmatmul.bf16.gmra.mxu0 %v179
    %v780 = vpop.f32.mrf.mxu0
    %v781 = vadd.f32 %v279, %v780
    %v782 = vpop.f32.mrf.mxu0
    %783 = vdwg.mxu0
    %784 = vmatpush.bf16.msra.mxu0 %v669
    %785 = vmatpush.bf16.msra.mxu0 %v663
    %786 = vmatpush.bf16.msra.mxu0 %v657
    %787 = vmatpush.bf16.msra.mxu0 %v651
    %788 = vmatpush.bf16.msra.mxu0 %v645
    %789 = vmatpush.bf16.msra.mxu0 %v639
    %790 = vmatpush.bf16.msra.mxu0 %v633
    %791 = vmatpush.bf16.msra.mxu0 %v627
    %792 = vmatmul.bf16.gmra.mxu0 %v180
    %v793 = vpop.f32.mrf.mxu0
    %v794 = vadd.f32 %v781, %v793
    %v795 = vpop.f32.mrf.mxu0
    %796 = vdwg.mxu0
    %797 = vmatpush.bf16.msra.mxu0 %v622
    %798 = vmatpush.bf16.msra.mxu0 %v616
    %799 = vmatpush.bf16.msra.mxu0 %v610
    %800 = vmatpush.bf16.msra.mxu0 %v604
    %801 = vmatpush.bf16.msra.mxu0 %v598
    %802 = vmatpush.bf16.msra.mxu0 %v592
    %803 = vmatpush.bf16.msra.mxu0 %v586
    %804 = vmatpush.bf16.msra.mxu0 %v580
    %805 = vmatmul.bf16.gmra.mxu0 %v179
    %v806 = vpop.f32.mrf.mxu0
    %v807 = vadd.f32 %v280, %v806
    %v808 = vpop.f32.mrf.mxu0
    %809 = vdwg.mxu0
    %810 = vmatpush.bf16.msra.mxu0 %v670
    %811 = vmatpush.bf16.msra.mxu0 %v664
    %812 = vmatpush.bf16.msra.mxu0 %v658
    %813 = vmatpush.bf16.msra.mxu0 %v652
    %814 = vmatpush.bf16.msra.mxu0 %v646
    %815 = vmatpush.bf16.msra.mxu0 %v640
    %816 = vmatpush.bf16.msra.mxu0 %v634
    %817 = vmatpush.bf16.msra.mxu0 %v628
    %818 = vmatmul.bf16.gmra.mxu0 %v180
    %v819 = vpop.f32.mrf.mxu0
    %v820 = vadd.f32 %v807, %v819
    %v821 = vpop.f32.mrf.mxu0
    %822 = vdwg.mxu0
    %823 = vmatpush.bf16.msra.mxu0 %v623
    %824 = vmatpush.bf16.msra.mxu0 %v617
    %825 = vmatpush.bf16.msra.mxu0 %v611
    %826 = vmatpush.bf16.msra.mxu0 %v605
    %827 = vmatpush.bf16.msra.mxu0 %v599
    %828 = vmatpush.bf16.msra.mxu0 %v593
    %829 = vmatpush.bf16.msra.mxu0 %v587
    %830 = vmatpush.bf16.msra.mxu0 %v581
    %831 = vmatmul.bf16.gmra.mxu0 %v179
    %v832 = vpop.f32.mrf.mxu0
    %v833 = vadd.f32 %v281, %v832
    %v834 = vpop.f32.mrf.mxu0
    %835 = vdwg.mxu0
    %836 = vmatpush.bf16.msra.mxu0 %v671
    %837 = vmatpush.bf16.msra.mxu0 %v665
    %838 = vmatpush.bf16.msra.mxu0 %v659
    %839 = vmatpush.bf16.msra.mxu0 %v653
    %840 = vmatpush.bf16.msra.mxu0 %v647
    %841 = vmatpush.bf16.msra.mxu0 %v641
    %842 = vmatpush.bf16.msra.mxu0 %v635
    %843 = vmatpush.bf16.msra.mxu0 %v629
    %844 = vmatmul.bf16.gmra.mxu0 %v180
    %v845 = vpop.f32.mrf.mxu0
    %v846 = vadd.f32 %v833, %v845
    %v847 = vpop.f32.mrf.mxu0
    %848 = vdwg.mxu0
    %849 = vmatpush.bf16.msra.mxu0 %v624
    %850 = vmatpush.bf16.msra.mxu0 %v618
    %851 = vmatpush.bf16.msra.mxu0 %v612
    %852 = vmatpush.bf16.msra.mxu0 %v606
    %853 = vmatpush.bf16.msra.mxu0 %v600
    %854 = vmatpush.bf16.msra.mxu0 %v594
    %855 = vmatpush.bf16.msra.mxu0 %v588
    %856 = vmatpush.bf16.msra.mxu0 %v582
    %857 = vmatmul.bf16.gmra.mxu0 %v179
    %v858 = vpop.f32.mrf.mxu0
    %v859 = vadd.f32 %v282, %v858
    %v860 = vpop.f32.mrf.mxu0
    %861 = vdwg.mxu0
    %862 = vmatpush.bf16.msra.mxu0 %v672
    %863 = vmatpush.bf16.msra.mxu0 %v666
    %864 = vmatpush.bf16.msra.mxu0 %v660
    %865 = vmatpush.bf16.msra.mxu0 %v654
    %866 = vmatpush.bf16.msra.mxu0 %v648
    %867 = vmatpush.bf16.msra.mxu0 %v642
    %868 = vmatpush.bf16.msra.mxu0 %v636
    %869 = vmatpush.bf16.msra.mxu0 %v630
    %870 = vmatmul.bf16.gmra.mxu0 %v180
    %v871 = vpop.f32.mrf.mxu0
    %v872 = vadd.f32 %v859, %v871
    %v873 = vpop.f32.mrf.mxu0
    %874 = vdwg.mxu0
    %875 = vmatpush.bf16.msra.mxu0 %v625
    %876 = vmatpush.bf16.msra.mxu0 %v619
    %877 = vmatpush.bf16.msra.mxu0 %v613
    %878 = vmatpush.bf16.msra.mxu0 %v607
    %879 = vmatpush.bf16.msra.mxu0 %v601
    %880 = vmatpush.bf16.msra.mxu0 %v595
    %881 = vmatpush.bf16.msra.mxu0 %v589
    %882 = vmatpush.bf16.msra.mxu0 %v583
    %883 = vmatmul.bf16.gmra.mxu0 %v179
    %v884 = vpop.f32.mrf.mxu0
    %v885 = vadd.f32 %v283, %v884
    %v886 = vpop.f32.mrf.mxu0
    %887 = vdwg.mxu0
    %888 = vmatpush.bf16.msra.mxu0 %v673
    %889 = vmatpush.bf16.msra.mxu0 %v667
    %890 = vmatpush.bf16.msra.mxu0 %v661
    %891 = vmatpush.bf16.msra.mxu0 %v655
    %892 = vmatpush.bf16.msra.mxu0 %v649
    %893 = vmatpush.bf16.msra.mxu0 %v643
    %894 = vmatpush.bf16.msra.mxu0 %v637
    %895 = vmatpush.bf16.msra.mxu0 %v631
    %896 = vmatmul.bf16.gmra.mxu0 %v180
    %v897 = vpop.f32.mrf.mxu0
    %v898 = vadd.f32 %v885, %v897
    %v899 = vpop.f32.mrf.mxu0
    %900 = vdwg.mxu0
    %901 = vmatpush.bf16.msra.mxu0 %v626
    %902 = vmatpush.bf16.msra.mxu0 %v620
    %903 = vmatpush.bf16.msra.mxu0 %v614
    %904 = vmatpush.bf16.msra.mxu0 %v608
    %905 = vmatpush.bf16.msra.mxu0 %v602
    %906 = vmatpush.bf16.msra.mxu0 %v596
    %907 = vmatpush.bf16.msra.mxu0 %v590
    %908 = vmatpush.bf16.msra.mxu0 %v584
    %909 = vmatmul.bf16.gmra.mxu0 %v179
    %v910 = vpop.f32.mrf.mxu0
    %v911 = vadd.f32 %v284, %v910
    %v912 = vpop.f32.mrf.mxu0
    %913 = vdwg.mxu0
    %914 = vmatpush.bf16.msra.mxu0 %v674
    %915 = vmatpush.bf16.msra.mxu0 %v668
    %916 = vmatpush.bf16.msra.mxu0 %v662
    %917 = vmatpush.bf16.msra.mxu0 %v656
    %918 = vmatpush.bf16.msra.mxu0 %v650
    %919 = vmatpush.bf16.msra.mxu0 %v644
    %920 = vmatpush.bf16.msra.mxu0 %v638
    %921 = vmatpush.bf16.msra.mxu0 %v632
    %922 = vmatmul.bf16.gmra.mxu0 %v180
    %v923 = vpop.f32.mrf.mxu0
    %v924 = vadd.f32 %v911, %v923
    %v925 = vpop.f32.mrf.mxu0
    %926 = vdwg.mxu0
    %v927 = vmax.f32 %v794, 0.0
    %v928 = vmax.f32 %v820, 0.0
    %v929 = vmax.f32 %v846, 0.0
    %v930 = vmax.f32 %v872, 0.0
    %v931 = vmax.f32 %v898, 0.0
    %v932 = vmax.f32 %v924, 0.0
    %v933 = vpack.c.bf16 %v927, %v927
    %v934 = vpack.c.bf16 %v928, %v928
    %v935 = vpack.c.bf16 %v929, %v929
    %v936 = vpack.c.bf16 %v930, %v930
    %v937 = vpack.c.bf16 %v931, %v931
    %v938 = vpack.c.bf16 %v932, %v932
    %v939 = vld [vmem:[#allocation11] sm:$0xf]
    %v940 = vld [vmem:[#allocation11 + $0x4] sm:$0xf]
    %v941 = vld [vmem:[#allocation11 + $0x8] sm:$0xf]
    %v942 = vld [vmem:[#allocation11 + $0xc] sm:$0xf]
    %v943 = vld [vmem:[#allocation11 + $0x10] sm:$0xf]
    %v944 = vld [vmem:[#allocation11 + $0x14] sm:$0xf]
    %v945 = vld [vmem:[#allocation11 + $0x18] sm:$0xf]
    %v946 = vld [vmem:[#allocation11 + $0x1c] sm:$0xf]
    %v947 = vld [vmem:[#allocation11 + $0x20] sm:$0xf]
    %v948 = vld [vmem:[#allocation11 + $0x24] sm:$0xf]
    %v949 = vld [vmem:[#allocation11 + $0x28] sm:$0xf]
    %v950 = vld [vmem:[#allocation11 + $0x2c] sm:$0xf]
    %v951 = vld [vmem:[#allocation11 + $0x30] sm:$0xf]
    %v952 = vld [vmem:[#allocation11 + $0x34] sm:$0xf]
    %v953 = vld [vmem:[#allocation11 + $0x38] sm:$0xf]
    %v954 = vld [vmem:[#allocation11 + $0x3c] sm:$0xf]
    %v955 = vld [vmem:[#allocation11 + $0x40] sm:$0xf]
    %v956 = vld [vmem:[#allocation11 + $0x44] sm:$0xf]
    %v957 = vld [vmem:[#allocation11 + $0x48] sm:$0xf]
    %v958 = vld [vmem:[#allocation11 + $0x4c] sm:$0xf]
    %v959 = vld [vmem:[#allocation11 + $0x50] sm:$0xf]
    %v960 = vld [vmem:[#allocation11 + $0x54] sm:$0xf]
    %v961 = vld [vmem:[#allocation11 + $0x58] sm:$0xf]
    %v962 = vld [vmem:[#allocation11 + $0x5c] sm:$0xf]
    %v963 = vld [vmem:[#allocation11 + $0x60] sm:$0xf]
    %v964 = vld [vmem:[#allocation11 + $0x64] sm:$0xf]
    %v965 = vld [vmem:[#allocation11 + $0x68] sm:$0xf]
    %v966 = vld [vmem:[#allocation11 + $0x6c] sm:$0xf]
    %v967 = vld [vmem:[#allocation11 + $0x70] sm:$0xf]
    %v968 = vld [vmem:[#allocation11 + $0x74] sm:$0xf]
    %v969 = vld [vmem:[#allocation11 + $0x78] sm:$0xf]
    %v970 = vld [vmem:[#allocation11 + $0x7c] sm:$0xf]
    %v971 = vld [vmem:[#allocation11 + $0x80] sm:$0xf]
    %v972 = vld [vmem:[#allocation11 + $0x84] sm:$0xf]
    %v973 = vld [vmem:[#allocation11 + $0x88] sm:$0xf]
    %v974 = vld [vmem:[#allocation11 + $0x8c] sm:$0xf]
    %v975 = vld [vmem:[#allocation11 + $0x90] sm:$0xf]
    %v976 = vld [vmem:[#allocation11 + $0x94] sm:$0xf]
    %v977 = vld [vmem:[#allocation11 + $0x98] sm:$0xf]
    %v978 = vld [vmem:[#allocation11 + $0x9c] sm:$0xf]
    %v979 = vld [vmem:[#allocation11 + $0xa0] sm:$0xf]
    %v980 = vld [vmem:[#allocation11 + $0xa4] sm:$0xf]
    %v981 = vld [vmem:[#allocation11 + $0xa8] sm:$0xf]
    %v982 = vld [vmem:[#allocation11 + $0xac] sm:$0xf]
    %v983 = vld [vmem:[#allocation11 + $0xb0] sm:$0xf]
    %v984 = vld [vmem:[#allocation11 + $0xb4] sm:$0xf]
    %v985 = vld [vmem:[#allocation11 + $0xb8] sm:$0xf]
    %v986 = vld [vmem:[#allocation11 + $0xbc] sm:$0xf]
    %v987 = vld [vmem:[#allocation11 + $0xc0] sm:$0xf]
    %v988 = vld [vmem:[#allocation11 + $0xc4] sm:$0xf]
    %v989 = vld [vmem:[#allocation11 + $0xc8] sm:$0xf]
    %v990 = vld [vmem:[#allocation11 + $0xcc] sm:$0xf]
    %v991 = vld [vmem:[#allocation11 + $0xd0] sm:$0xf]
    %v992 = vld [vmem:[#allocation11 + $0xd4] sm:$0xf]
    %v993 = vld [vmem:[#allocation11 + $0xd8] sm:$0xf]
    %v994 = vld [vmem:[#allocation11 + $0xdc] sm:$0xf]
    %v995 = vld [vmem:[#allocation11 + $0xe0] sm:$0xf]
    %v996 = vld [vmem:[#allocation11 + $0xe4] sm:$0xf]
    %v997 = vld [vmem:[#allocation11 + $0xe8] sm:$0xf]
    %v998 = vld [vmem:[#allocation11 + $0xec] sm:$0xf]
    %v999 = vld [vmem:[#allocation11 + $0xf0] sm:$0xf]
    %v1000 = vld [vmem:[#allocation11 + $0xf4] sm:$0xf]
    %v1001 = vld [vmem:[#allocation11 + $0xf8] sm:$0xf]
    %v1002 = vld [vmem:[#allocation11 + $0xfc] sm:$0xf]
    %v1003 = vld [vmem:[#allocation11 + $0x100] sm:$0xf]
    %v1004 = vld [vmem:[#allocation11 + $0x104] sm:$0xf]
    %v1005 = vld [vmem:[#allocation11 + $0x108] sm:$0xf]
    %v1006 = vld [vmem:[#allocation11 + $0x10c] sm:$0xf]
    %v1007 = vld [vmem:[#allocation11 + $0x110] sm:$0xf]
    %v1008 = vld [vmem:[#allocation11 + $0x114] sm:$0xf]
    %v1009 = vld [vmem:[#allocation11 + $0x118] sm:$0xf]
    %v1010 = vld [vmem:[#allocation11 + $0x11c] sm:$0xf]
    %v1011 = vld [vmem:[#allocation11 + $0x120] sm:$0xf]
    %v1012 = vld [vmem:[#allocation11 + $0x124] sm:$0xf]
    %v1013 = vld [vmem:[#allocation11 + $0x128] sm:$0xf]
    %v1014 = vld [vmem:[#allocation11 + $0x12c] sm:$0xf]
    %v1015 = vld [vmem:[#allocation11 + $0x130] sm:$0xf]
    %v1016 = vld [vmem:[#allocation11 + $0x134] sm:$0xf]
    %v1017 = vld [vmem:[#allocation11 + $0x138] sm:$0xf]
    %v1018 = vld [vmem:[#allocation11 + $0x13c] sm:$0xf]
    %v1019 = vld [vmem:[#allocation11 + $0x140] sm:$0xf]
    %v1020 = vld [vmem:[#allocation11 + $0x144] sm:$0xf]
    %v1021 = vld [vmem:[#allocation11 + $0x148] sm:$0xf]
    %v1022 = vld [vmem:[#allocation11 + $0x14c] sm:$0xf]
    %v1023 = vld [vmem:[#allocation11 + $0x150] sm:$0xf]
    %v1024 = vld [vmem:[#allocation11 + $0x154] sm:$0xf]
    %v1025 = vld [vmem:[#allocation11 + $0x158] sm:$0xf]
    %v1026 = vld [vmem:[#allocation11 + $0x15c] sm:$0xf]
    %v1027 = vld [vmem:[#allocation11 + $0x160] sm:$0xf]
    %v1028 = vld [vmem:[#allocation11 + $0x164] sm:$0xf]
    %v1029 = vld [vmem:[#allocation11 + $0x168] sm:$0xf]
    %v1030 = vld [vmem:[#allocation11 + $0x16c] sm:$0xf]
    %v1031 = vld [vmem:[#allocation11 + $0x170] sm:$0xf]
    %v1032 = vld [vmem:[#allocation11 + $0x174] sm:$0xf]
    %v1033 = vld [vmem:[#allocation11 + $0x178] sm:$0xf]
    %v1034 = vld [vmem:[#allocation11 + $0x17c] sm:$0xf]
    %v1035 = vld [vmem:[%s6] sm:$0x1]
    %v1037 = vperm.slane %v1035, 0
    %v1135 = vunpack.c.l.b16 %v939
    %v1136 = vunpack.c.l.b16 %v940
    %v1137 = vunpack.c.l.b16 %v941
    %v1138 = vunpack.c.l.b16 %v942
    %v1139 = vunpack.c.l.b16 %v943
    %v1140 = vunpack.c.l.b16 %v944
    %v1141 = vunpack.c.l.b16 %v945
    %v1142 = vunpack.c.l.b16 %v946
    %v1143 = vunpack.c.l.b16 %v947
    %v1144 = vunpack.c.l.b16 %v948
    %v1145 = vunpack.c.l.b16 %v949
    %v1146 = vunpack.c.l.b16 %v950
    %v1147 = vunpack.c.l.b16 %v951
    %v1148 = vunpack.c.l.b16 %v952
    %v1149 = vunpack.c.l.b16 %v953
    %v1150 = vunpack.c.l.b16 %v954
    %v1151 = vunpack.c.l.b16 %v955
    %v1152 = vunpack.c.l.b16 %v956
    %v1153 = vunpack.c.l.b16 %v957
    %v1154 = vunpack.c.l.b16 %v958
    %v1155 = vunpack.c.l.b16 %v959
    %v1156 = vunpack.c.l.b16 %v960
    %v1157 = vunpack.c.l.b16 %v961
    %v1158 = vunpack.c.l.b16 %v962
    %v1159 = vunpack.c.l.b16 %v963
    %v1160 = vunpack.c.l.b16 %v964
    %v1161 = vunpack.c.l.b16 %v965
    %v1162 = vunpack.c.l.b16 %v966
    %v1163 = vunpack.c.l.b16 %v967
    %v1164 = vunpack.c.l.b16 %v968
    %v1165 = vunpack.c.l.b16 %v969
    %v1166 = vunpack.c.l.b16 %v970
    %v1167 = vunpack.c.l.b16 %v971
    %v1168 = vunpack.c.l.b16 %v972
    %v1169 = vunpack.c.l.b16 %v973
    %v1170 = vunpack.c.l.b16 %v974
    %v1171 = vunpack.c.l.b16 %v975
    %v1172 = vunpack.c.l.b16 %v976
    %v1173 = vunpack.c.l.b16 %v977
    %v1174 = vunpack.c.l.b16 %v978
    %v1175 = vunpack.c.l.b16 %v979
    %v1176 = vunpack.c.l.b16 %v980
    %v1177 = vunpack.c.l.b16 %v981
    %v1178 = vunpack.c.l.b16 %v982
    %v1179 = vunpack.c.l.b16 %v983
    %v1180 = vunpack.c.l.b16 %v984
    %v1181 = vunpack.c.l.b16 %v985
    %v1182 = vunpack.c.l.b16 %v986
    %v1183 = vunpack.c.l.b16 %v987
    %v1184 = vunpack.c.l.b16 %v988
    %v1185 = vunpack.c.l.b16 %v989
    %v1186 = vunpack.c.l.b16 %v990
    %v1187 = vunpack.c.l.b16 %v991
    %v1188 = vunpack.c.l.b16 %v992
    %v1189 = vunpack.c.l.b16 %v993
    %v1190 = vunpack.c.l.b16 %v994
    %v1191 = vunpack.c.l.b16 %v995
    %v1192 = vunpack.c.l.b16 %v996
    %v1193 = vunpack.c.l.b16 %v997
    %v1194 = vunpack.c.l.b16 %v998
    %v1195 = vunpack.c.l.b16 %v999
    %v1196 = vunpack.c.l.b16 %v1000
    %v1197 = vunpack.c.l.b16 %v1001
    %v1198 = vunpack.c.l.b16 %v1002
    %v1199 = vunpack.c.l.b16 %v1003
    %v1200 = vunpack.c.l.b16 %v1004
    %v1201 = vunpack.c.l.b16 %v1005
    %v1202 = vunpack.c.l.b16 %v1006
    %v1203 = vunpack.c.l.b16 %v1007
    %v1204 = vunpack.c.l.b16 %v1008
    %v1205 = vunpack.c.l.b16 %v1009
    %v1206 = vunpack.c.l.b16 %v1010
    %v1207 = vunpack.c.l.b16 %v1011
    %v1208 = vunpack.c.l.b16 %v1012
    %v1209 = vunpack.c.l.b16 %v1013
    %v1210 = vunpack.c.l.b16 %v1014
    %v1211 = vunpack.c.l.b16 %v1015
    %v1212 = vunpack.c.l.b16 %v1016
    %v1213 = vunpack.c.l.b16 %v1017
    %v1214 = vunpack.c.l.b16 %v1018
    %v1215 = vunpack.c.l.b16 %v1019
    %v1216 = vunpack.c.l.b16 %v1020
    %v1217 = vunpack.c.l.b16 %v1021
    %v1218 = vunpack.c.l.b16 %v1022
    %v1219 = vunpack.c.l.b16 %v1023
    %v1220 = vunpack.c.l.b16 %v1024
    %v1221 = vunpack.c.l.b16 %v1025
    %v1222 = vunpack.c.l.b16 %v1026
    %v1223 = vunpack.c.l.b16 %v1027
    %v1224 = vunpack.c.l.b16 %v1028
    %v1225 = vunpack.c.l.b16 %v1029
    %v1226 = vunpack.c.l.b16 %v1030
    %v1227 = vunpack.c.l.b16 %v1031
    %v1228 = vunpack.c.l.b16 %v1032
    %v1229 = vunpack.c.l.b16 %v1033
    %v1230 = vunpack.c.l.b16 %v1034
    %v1231 = vpack.c.b16 %v1136, %v1135
    %v1232 = vpack.c.b16 %v1138, %v1137
    %v1233 = vpack.c.b16 %v1140, %v1139
    %v1234 = vpack.c.b16 %v1142, %v1141
    %v1235 = vpack.c.b16 %v1144, %v1143
    %v1236 = vpack.c.b16 %v1146, %v1145
    %v1237 = vpack.c.b16 %v1148, %v1147
    %v1238 = vpack.c.b16 %v1150, %v1149
    %v1239 = vpack.c.b16 %v1152, %v1151
    %v1240 = vpack.c.b16 %v1154, %v1153
    %v1241 = vpack.c.b16 %v1156, %v1155
    %v1242 = vpack.c.b16 %v1158, %v1157
    %v1243 = vpack.c.b16 %v1160, %v1159
    %v1244 = vpack.c.b16 %v1162, %v1161
    %v1245 = vpack.c.b16 %v1164, %v1163
    %v1246 = vpack.c.b16 %v1166, %v1165
    %v1247 = vpack.c.b16 %v1168, %v1167
    %v1248 = vpack.c.b16 %v1170, %v1169
    %v1249 = vpack.c.b16 %v1172, %v1171
    %v1250 = vpack.c.b16 %v1174, %v1173
    %v1251 = vpack.c.b16 %v1176, %v1175
    %v1252 = vpack.c.b16 %v1178, %v1177
    %v1253 = vpack.c.b16 %v1180, %v1179
    %v1254 = vpack.c.b16 %v1182, %v1181
    %v1255 = vpack.c.b16 %v1184, %v1183
    %v1256 = vpack.c.b16 %v1186, %v1185
    %v1257 = vpack.c.b16 %v1188, %v1187
    %v1258 = vpack.c.b16 %v1190, %v1189
    %v1259 = vpack.c.b16 %v1192, %v1191
    %v1260 = vpack.c.b16 %v1194, %v1193
    %v1261 = vpack.c.b16 %v1196, %v1195
    %v1262 = vpack.c.b16 %v1198, %v1197
    %v1263 = vpack.c.b16 %v1200, %v1199
    %v1264 = vpack.c.b16 %v1202, %v1201
    %v1265 = vpack.c.b16 %v1204, %v1203
    %v1266 = vpack.c.b16 %v1206, %v1205
    %v1267 = vpack.c.b16 %v1208, %v1207
    %v1268 = vpack.c.b16 %v1210, %v1209
    %v1269 = vpack.c.b16 %v1212, %v1211
    %v1270 = vpack.c.b16 %v1214, %v1213
    %v1271 = vpack.c.b16 %v1216, %v1215
    %v1272 = vpack.c.b16 %v1218, %v1217
    %v1273 = vpack.c.b16 %v1220, %v1219
    %v1274 = vpack.c.b16 %v1222, %v1221
    %v1275 = vpack.c.b16 %v1224, %v1223
    %v1276 = vpack.c.b16 %v1226, %v1225
    %v1277 = vpack.c.b16 %v1228, %v1227
    %v1278 = vpack.c.b16 %v1230, %v1229
    %1327 = vmatpush.bf16.msra.mxu0 %v1238
    %1328 = vmatpush.bf16.msra.mxu0 %v1237
    %1329 = vmatpush.bf16.msra.mxu0 %v1236
    %1330 = vmatpush.bf16.msra.mxu0 %v1235
    %1331 = vmatpush.bf16.msra.mxu0 %v1234
    %1332 = vmatpush.bf16.msra.mxu0 %v1233
    %1333 = vmatpush.bf16.msra.mxu0 %v1232
    %1334 = vmatpush.bf16.msra.mxu0 %v1231
    %1335 = vmatmul.bf16.gmra.mxu0 %v933
    %v1336 = vpop.f32.mrf.mxu0
    %v1337 = vadd.f32 %v1037, %v1336
    %v1338 = vpop.f32.mrf.mxu0
    %1339 = vdwg.mxu0
    %1340 = vmatpush.bf16.msra.mxu0 %v1246
    %1341 = vmatpush.bf16.msra.mxu0 %v1245
    %1342 = vmatpush.bf16.msra.mxu0 %v1244
    %1343 = vmatpush.bf16.msra.mxu0 %v1243
    %1344 = vmatpush.bf16.msra.mxu0 %v1242
    %1345 = vmatpush.bf16.msra.mxu0 %v1241
    %1346 = vmatpush.bf16.msra.mxu0 %v1240
    %1347 = vmatpush.bf16.msra.mxu0 %v1239
    %1348 = vmatmul.bf16.gmra.mxu0 %v934
    %v1349 = vpop.f32.mrf.mxu0
    %v1350 = vadd.f32 %v1337, %v1349
    %v1351 = vpop.f32.mrf.mxu0
    %1352 = vdwg.mxu0
    %1353 = vmatpush.bf16.msra.mxu0 %v1254
    %1354 = vmatpush.bf16.msra.mxu0 %v1253
    %1355 = vmatpush.bf16.msra.mxu0 %v1252
    %1356 = vmatpush.bf16.msra.mxu0 %v1251
    %1357 = vmatpush.bf16.msra.mxu0 %v1250
    %1358 = vmatpush.bf16.msra.mxu0 %v1249
    %1359 = vmatpush.bf16.msra.mxu0 %v1248
    %1360 = vmatpush.bf16.msra.mxu0 %v1247
    %1361 = vmatmul.bf16.gmra.mxu0 %v935
    %v1362 = vpop.f32.mrf.mxu0
    %v1363 = vadd.f32 %v1350, %v1362
    %v1364 = vpop.f32.mrf.mxu0
    %1365 = vdwg.mxu0
    %1366 = vmatpush.bf16.msra.mxu0 %v1262
    %1367 = vmatpush.bf16.msra.mxu0 %v1261
    %1368 = vmatpush.bf16.msra.mxu0 %v1260
    %1369 = vmatpush.bf16.msra.mxu0 %v1259
    %1370 = vmatpush.bf16.msra.mxu0 %v1258
    %1371 = vmatpush.bf16.msra.mxu0 %v1257
    %1372 = vmatpush.bf16.msra.mxu0 %v1256
    %1373 = vmatpush.bf16.msra.mxu0 %v1255
    %1374 = vmatmul.bf16.gmra.mxu0 %v936
    %v1375 = vpop.f32.mrf.mxu0
    %v1376 = vadd.f32 %v1363, %v1375
    %v1377 = vpop.f32.mrf.mxu0
    %1378 = vdwg.mxu0
    %1379 = vmatpush.bf16.msra.mxu0 %v1270
    %1380 = vmatpush.bf16.msra.mxu0 %v1269
    %1381 = vmatpush.bf16.msra.mxu0 %v1268
    %1382 = vmatpush.bf16.msra.mxu0 %v1267
    %1383 = vmatpush.bf16.msra.mxu0 %v1266
    %1384 = vmatpush.bf16.msra.mxu0 %v1265
    %1385 = vmatpush.bf16.msra.mxu0 %v1264
    %1386 = vmatpush.bf16.msra.mxu0 %v1263
    %1387 = vmatmul.bf16.gmra.mxu0 %v937
    %v1388 = vpop.f32.mrf.mxu0
    %v1389 = vadd.f32 %v1376, %v1388
    %v1390 = vpop.f32.mrf.mxu0
    %1391 = vdwg.mxu0
    %1392 = vmatpush.bf16.msra.mxu0 %v1278
    %1393 = vmatpush.bf16.msra.mxu0 %v1277
    %1394 = vmatpush.bf16.msra.mxu0 %v1276
    %1395 = vmatpush.bf16.msra.mxu0 %v1275
    %1396 = vmatpush.bf16.msra.mxu0 %v1274
    %1397 = vmatpush.bf16.msra.mxu0 %v1273
    %1398 = vmatpush.bf16.msra.mxu0 %v1272
    %1399 = vmatpush.bf16.msra.mxu0 %v1271
    %1400 = vmatmul.bf16.gmra.mxu0 %v938
    %v1401 = vpop.f32.mrf.mxu0
    %v1402 = vadd.f32 %v1389, %v1401
    %v1403 = vpop.f32.mrf.mxu0
    %1404 = vdwg.mxu0
    %1405 = vst [vmem:[#allocation13] sm:$0xff] %v1402
    // Predicated region
    $region54: #{tpu_custom_call.1} parent=1 // pred_check
      _
    $region55: #{tpu_custom_call.1} parent=1 // pred_check_branch
      %1407 = sbr.rel (0) target = $region57
    $region56: #{tpu_custom_call.1} parent=1 // pred_region
      %1409 = vsyncadd [#allocation4], 0
      %s1411 = sshll.u32 [#allocation13], 4
      %s1412 = int_to_ptr.vmem [resolvable:$true] %s1411
      %s1413 = sshll.u32 %s7, 4
      %s1414 = int_to_ptr.hbm [resolvable:$true] %s1413
      %1416 = dma.vmem_to_hbm [thread:$0]  %s1412, 128, %s1414, [#allocation4]
    $region57: #{tpu_custom_call.1} parent=1 // pred_fallthru
      _
    // Predicated region
    $region58: #{tpu_custom_call.1} parent=1 // pred_check
      _
    $region59: #{tpu_custom_call.1} parent=1 // pred_check_branch
      %1418 = sbr.rel (0) target = $region61
    $region60: #{tpu_custom_call.1} parent=1 // pred_region
      %1420 = dma.done [#allocation4], 128
    $region61: #{tpu_custom_call.1} parent=1 // pred_fallthru
      _
    %1421 = vsyncpa [#allocation3], 1
    %1422 = vsyncpa [#allocation6], 1
    %1423 = vsyncpa [#allocation9], 1
    %1424 = vsyncpa [#allocation12], 1
    %1425 = vsyncpa [#allocation4], 1

</llo_original>
